<compile_context>
chip_gen: v5e
topology: v5e:2x2
jax: 0.10.0
libtpu: 0.0.40
codegen_flags: <defaults>
</compile_context>

<pallas_src>
import functools
import math

import jax
import jax.numpy as jnp
from jax import lax
from jax.experimental import pallas as pl
from jax.experimental.pallas import tpu as pltpu


# ----------------------------- Pallas kernel --------------------------------

def _linear_append_kernel(x_ref, w_ref, b_ref, emb_ref, o_ref, *,
                          n_data_rows, append):
    """One row-tile of: out = x @ W + b, with rows >= n_data_rows replaced by
    the appended embedding (only when `append` is statically True).

    x_ref:   (TM, F)      f32   row tile of the flattened (S_out*B, F) input
    w_ref:   (F, Epad)    bf16  VMEM-resident weights
    b_ref:   (1, Epad)    f32   bias
    emb_ref: (1, Epad)    f32   embedding row to append
    o_ref:   (TM, Epad)   f32   lane-dense output tile
    """
    # bf16 operands on the MXU, f32 accumulation.
    y = jnp.dot(x_ref[...].astype(jnp.bfloat16), w_ref[...],
                preferred_element_type=jnp.float32)
    y = y + b_ref[...]                                   # f32 VPU epilogue

    if append:  # static Python bool -> branch resolved at trace time
        tm = x_ref.shape[0]
        row0 = pl.program_id(0) * tm
        rows = row0 + lax.broadcasted_iota(jnp.int32, (tm, 1), 0)
        # Rows past the real data (the flag row / padding) become the emb row.
        y = jnp.where(rows >= n_data_rows, emb_ref[...], y)

    o_ref[...] = y.astype(o_ref.dtype)


# ----------------------------- wrapper ---------------------------------------

def _round_up(x, m):
    return ((x + m - 1) // m) * m


def _linear_append_pallas(x_rows, w, b, emb, *, n_data_rows, append,
                          block_rows=512):
    """x_rows: (M_out, F) f32.  Returns (M_out, E) f32 where rows with index
    >= n_data_rows (if append) contain `emb` instead of the linear encoding."""
    M_out, F = x_rows.shape
    E = w.shape[1]
    Epad = _round_up(E, 128)                      # lane-dense output stores
    TM = min(block_rows, _round_up(M_out, 8))     # row tile, multiple of 8
    M_pad = _round_up(M_out, TM)

    x_p = jnp.pad(x_rows, ((0, M_pad - M_out), (0, 0)))
    w_p = jnp.pad(w, ((0, 0), (0, Epad - E))).astype(jnp.bfloat16)
    b_p = jnp.pad(b, (0, Epad - E)).reshape(1, Epad).astype(jnp.float32)
    e_p = jnp.pad(emb, (0, Epad - E)).reshape(1, Epad).astype(jnp.float32)

    grid = (pl.cdiv(M_pad, TM),)

    # VMEM estimate: double-buffered x tile + out tile, plus resident params.
    est = 2 * TM * (F + Epad) * 4 + F * Epad * 2 + 2 * Epad * 4
    vmem_limit = max(32 * 1024 * 1024, 4 * est)   # 2x headroom, >= default

    kern = functools.partial(_linear_append_kernel,
                             n_data_rows=n_data_rows, append=append)

    out = pl.pallas_call(
        kern,
        out_shape=jax.ShapeDtypeStruct((M_pad, Epad), jnp.float32),
        grid=grid,
        in_specs=[
            pl.BlockSpec((TM, F), lambda i: (i, 0)),      # row tile
            pl.BlockSpec((F, Epad), lambda i: (0, 0)),    # weights: resident
            pl.BlockSpec((1, Epad), lambda i: (0, 0)),    # bias:    resident
            pl.BlockSpec((1, Epad), lambda i: (0, 0)),    # emb:     resident
        ],
        out_specs=pl.BlockSpec((TM, Epad), lambda i: (i, 0)),
        compiler_params=pltpu.CompilerParams(
            dimension_semantics=("parallel",),
            vmem_limit_bytes=int(vmem_limit)),
    )(x_p, w_p, b_p, e_p)

    return out[:M_out, :E]


def append_embedding_encoder_forward(x, params):
    """x: (S+1, B, num_features).  Returns (S[+1], B, emsize)."""
    flag = x[-1]
    append_embedding = bool(jnp.all(flag == 1.0))
    if not append_embedding:
        assert bool(jnp.all(flag == 0.0)), (
            "You need to specify as last position whether to append embedding. "
            "If you don't want this behavior, please use the wrapped encoder "
            "instead.")

    Sp1, B, F = x.shape
    S = Sp1 - 1
    S_out = S + 1 if append_embedding else S
    E = params["w"].shape[1]

    # When appending, keep the flag row's slots in the output; the kernel
    # overwrites them with `emb` (fused, no extra concat/copy through HBM).
    x_rows = x[:S_out].reshape(S_out * B, F)

    out = _linear_append_pallas(x_rows, params["w"], params["b"], params["emb"],
                                n_data_rows=S * B, append=append_embedding)
    return out.reshape(S_out, B, E)


# ----------------------------- params & reference ----------------------------

def init_params(key, num_features, emsize):
    kw, kb, ke = jax.random.split(key, 3)
    bound = 1.0 / math.sqrt(num_features)
    w = jax.random.uniform(kw, (num_features, emsize), jnp.float32, -bound, bound)
    b = jax.random.uniform(kb, (emsize,), jnp.float32, -bound, bound)
    # PyTorch initializes emb to zeros; random values are used here so the
    # append path is numerically distinguishable in the check.
    emb = jax.random.normal(ke, (emsize,), jnp.float32)
    return {"w": w, "b": b, "emb": emb}


def ref_forward(x, params):
    """Pure-JAX reference of the module forward (Linear base encoder)."""
    flag = x[-1]
    append_embedding = bool(jnp.all(flag == 1.0))
    xd = x[:-1]
    enc = jnp.einsum("sbf,fe->sbe", xd, params["w"]) + params["b"]
    if append_embedding:
        emb_row = jnp.broadcast_to(params["emb"][None, None, :],
                                   (1, xd.shape[1], params["emb"].shape[0]))
        enc = jnp.concatenate([enc, emb_row], axis=0)
    return enc


# ----------------------------- main ------------------------------------------

if __name__ == "__main__":
    import numpy as np

    key = jax.random.PRNGKey(0)
    kx, kp = jax.random.split(key)

    S, B, F, E = 8, 2, 16, 32
    params = init_params(kp, F, E)
    x_data = jax.random.normal(kx, (S, B, F), jnp.float32)

    # Append path: flag row of all 1.0
    x_app = jnp.concatenate([x_data, jnp.ones((1, B, F), jnp.float32)], axis=0)
    out_app = jax.block_until_ready(append_embedding_encoder_forward(x_app, params))
    assert out_app.shape == (S + 1, B, E), out_app.shape
    np.testing.assert_allclose(np.asarray(out_app),
                               np.asarray(ref_forward(x_app, params)),
                               rtol=2e-2, atol=2e-2)

    # No-append path: flag row of all 0.0
    x_noapp = jnp.concatenate([x_data, jnp.zeros((1, B, F), jnp.float32)], axis=0)
    out_noapp = jax.block_until_ready(append_embedding_encoder_forward(x_noapp, params))
    assert out_noapp.shape == (S, B, E), out_noapp.shape
    np.testing.assert_allclose(np.asarray(out_noapp),
                               np.asarray(ref_forward(x_noapp, params)),
                               rtol=2e-2, atol=2e-2)

    print("KERNEL_OK")
</pallas_src>

<mosaic_0001>
module attributes {stable_mosaic.version = 11 : i64} {
  func.func @_linear_append_kernel(%arg0: i32, %arg1: memref<24x16xf32, #tpu.memory_space<vmem>>, %arg2: memref<16x128xbf16, #tpu.memory_space<vmem>>, %arg3: memref<1x128xf32, #tpu.memory_space<vmem>>, %arg4: memref<1x128xf32, #tpu.memory_space<vmem>>, %arg5: memref<24x128xf32, #tpu.memory_space<vmem>>) attributes {dimension_semantics = [#tpu.dimension_semantics<parallel>], iteration_bounds = array<i64: 1>, scalar_prefetch = 0 : i64, scratch_operands = 0 : i64, tpu.core_type = #tpu.core_type<tc>, window_params = [{transform_indices = @transform_0, window_bounds = array<i64: 24, 16>}, {pipeline_mode = #tpu.pipeline_mode<synchronous>, transform_indices = @transform_1, window_bounds = array<i64: 16, 128>}, {pipeline_mode = #tpu.pipeline_mode<synchronous>, transform_indices = @transform_2, window_bounds = array<i64: 1, 128>}, {pipeline_mode = #tpu.pipeline_mode<synchronous>, transform_indices = @transform_3, window_bounds = array<i64: 1, 128>}, {transform_indices = @transform_4, window_bounds = array<i64: 24, 128>}]} {
    %c0 = arith.constant 0 : index
    %c0_0 = arith.constant 0 : index
    %0 = vector.load %arg1[%c0, %c0_0] : memref<24x16xf32, #tpu.memory_space<vmem>>, vector<24x16xf32>
    %1 = arith.truncf %0 : vector<24x16xf32> to vector<24x16xbf16>
    %c0_1 = arith.constant 0 : index
    %c0_2 = arith.constant 0 : index
    %2 = vector.load %arg2[%c0_1, %c0_2] : memref<16x128xbf16, #tpu.memory_space<vmem>>, vector<16x128xbf16>
    %cst = arith.constant dense<0.000000e+00> : vector<24x128xf32>
    %3 = tpu.matmul %1, %2, %cst {dimension_numbers = #tpu.dot_dimension_numbers<[1], [0], [0], [1], [0, 0, 1, 1], [], []>} : vector<24x16xbf16>, vector<16x128xbf16>, vector<24x128xf32> -> vector<24x128xf32>
    %c0_3 = arith.constant 0 : index
    %c0_4 = arith.constant 0 : index
    %4 = vector.load %arg3[%c0_3, %c0_4] : memref<1x128xf32, #tpu.memory_space<vmem>>, vector<1x128xf32>
    %5 = vector.broadcast %4 : vector<1x128xf32> to vector<24x128xf32>
    %6 = arith.addf %3, %5 : vector<24x128xf32>
    %c24_i32 = arith.constant 24 : i32
    %7 = arith.muli %arg0, %c24_i32 : i32
    %8 = tpu.iota {dimensions = array<i32: 0>} : vector<24x1xi32>
    %9 = vector.broadcast %7 : i32 to vector<24x1xi32>
    %10 = arith.addi %9, %8 : vector<24x1xi32>
    %c16_i32 = arith.constant 16 : i32
    %11 = vector.broadcast %c16_i32 : i32 to vector<24x1xi32>
    %12 = arith.cmpi sge, %10, %11 : vector<24x1xi32>
    %c0_5 = arith.constant 0 : index
    %c0_6 = arith.constant 0 : index
    %13 = vector.load %arg4[%c0_5, %c0_6] : memref<1x128xf32, #tpu.memory_space<vmem>>, vector<1x128xf32>
    %14 = vector.shape_cast %12 : vector<24x1xi1> to vector<24x1xi1>
    %15 = vector.broadcast %14 : vector<24x1xi1> to vector<24x128xi1>
    %16 = vector.shape_cast %13 : vector<1x128xf32> to vector<1x128xf32>
    %17 = vector.broadcast %16 : vector<1x128xf32> to vector<24x128xf32>
    %18 = arith.select %15, %17, %6 : vector<24x128xi1>, vector<24x128xf32>
    %c0_7 = arith.constant 0 : index
    %c0_8 = arith.constant 0 : index
    %19 = vector.load %arg5[%c0_7, %c0_8] : memref<24x128xf32, #tpu.memory_space<vmem>>, vector<24x128xf32>
    tpu.vector_store %arg5[%c0_7, %c0_8], %18 {strides = array<i32>} : memref<24x128xf32, #tpu.memory_space<vmem>>, vector<24x128xf32>,
    return
  }
  func.func @transform_0(%arg0: i32) -> (i32, i32) {
    %c0_i32 = arith.constant 0 : i32
    %c0_i32_0 = arith.constant 0 : i32
    return %arg0, %c0_i32 : i32, i32
  }
  func.func @transform_1(%arg0: i32) -> (i32, i32) {
    %c0_i32 = arith.constant 0 : i32
    %c0_i32_0 = arith.constant 0 : i32
    %c0_i32_1 = arith.constant 0 : i32
    return %c0_i32, %c0_i32_0 : i32, i32
  }
  func.func @transform_2(%arg0: i32) -> (i32, i32) {
    %c0_i32 = arith.constant 0 : i32
    %c0_i32_0 = arith.constant 0 : i32
    %c0_i32_1 = arith.constant 0 : i32
    return %c0_i32, %c0_i32_0 : i32, i32
  }
  func.func @transform_3(%arg0: i32) -> (i32, i32) {
    %c0_i32 = arith.constant 0 : i32
    %c0_i32_0 = arith.constant 0 : i32
    %c0_i32_1 = arith.constant 0 : i32
    return %c0_i32, %c0_i32_0 : i32, i32
  }
  func.func @transform_4(%arg0: i32) -> (i32, i32) {
    %c0_i32 = arith.constant 0 : i32
    %c0_i32_0 = arith.constant 0 : i32
    return %arg0, %c0_i32 : i32, i32
  }
}

</mosaic_0001>

<llo_original>
// kernel: tpu_custom_call.1
$region0: #{tpu_custom_call.1}
  #allocation0 [shape = 'u32[]', space=smem, size = 0x4, offset = 0x4, fixed_abs, tag = 'smem constant byte address 0x4 - core index']
  #allocation1 [shape = 'u32[72,128]{1,0:T(1,128)}', space=vmem, size = 0x9000, scoped, tag = 'internal scratch']
  %s0 = inlined_call_operand.vmem [shape: f32[24,16], index: 0, kind: input, shape index: {}]
  %s1 = inlined_call_operand.vmem [shape: bf16[16,128], index: 1, kind: input, shape index: {}]
  %s2 = inlined_call_operand.vmem [shape: f32[1,128], index: 2, kind: input, shape index: {}]
  %s3 = inlined_call_operand.vmem [shape: f32[1,128], index: 3, kind: input, shape index: {}]
  %s4 = inlined_call_operand.hbm [shape: f32[24,128], index: 4, kind: output, shape index: {}]
  %s5 = sld [smem:[#allocation0]]
  $region26: #{tpu_custom_call.1} parent=0
    _
  %s7 = ssub.s32 1, %s5
  %s8 = scalar_select 0, %s7, %s5
  $region1: #{tpu_custom_call.1} parent=0
    #allocation2 [shape = 'u8[12288]{0}', space=vmem, size = 0x3000, scoped, tag = 'output window, operand 0, single buffered']
    #allocation3 [shape = 's32[1]{0}', space=sflag, size = 0x4, scoped, tag = 'scoped memory for tpu_custom_call.1']
    %9 = vsyncpa [#allocation3], 0
    // Predicated region
    $region2: #{tpu_custom_call.1} parent=1 // pred_check
      _
    $region3: #{tpu_custom_call.1} parent=1 // pred_check_branch
      %11 = sbr.rel (0) target = $region5
    $region4: #{tpu_custom_call.1} parent=1 // pred_region
      _
    $region5: #{tpu_custom_call.1} parent=1 // pred_fallthru
      _
    // Predicated region
    $region6: #{tpu_custom_call.1} parent=1 // pred_check
      _
    $region7: #{tpu_custom_call.1} parent=1 // pred_check_branch
      %13 = sbr.rel (0) target = $region9
    $region8: #{tpu_custom_call.1} parent=1 // pred_region
      _
    $region9: #{tpu_custom_call.1} parent=1 // pred_fallthru
      _
    // Predicated region
    $region10: #{tpu_custom_call.1} parent=1 // pred_check
      _
    $region11: #{tpu_custom_call.1} parent=1 // pred_check_branch
      %15 = sbr.rel (0) target = $region13
    $region12: #{tpu_custom_call.1} parent=1 // pred_region
      _
    $region13: #{tpu_custom_call.1} parent=1 // pred_fallthru
      _
    // Predicated region
    $region14: #{tpu_custom_call.1} parent=1 // pred_check
      _
    $region15: #{tpu_custom_call.1} parent=1 // pred_check_branch
      %17 = sbr.rel (0) target = $region17
    $region16: #{tpu_custom_call.1} parent=1 // pred_region
      _
    $region17: #{tpu_custom_call.1} parent=1 // pred_fallthru
      _
    %v19 = vld [vmem:[%s0] sm:$0xff]
    %v20 = vld [vmem:[%s0 + $0x8] sm:$0xff]
    %v21 = vld [vmem:[%s0 + $0x10] sm:$0xff]
    %v22 = vpack.c.bf16 %v20, %v19
    %v23 = vpack.c.bf16 %v21, %v21
    %v24 = vld [vmem:[%s1] sm:$0xf]
    %v25 = vld [vmem:[%s1 + $0x4] sm:$0xf]
    %v26 = vld [vmem:[%s2] sm:$0x1]
    %v28 = vperm.slane %v26, 0
    %v32 = vunpack.c.l.b16 %v24
    %v33 = vunpack.c.l.b16 %v25
    %v34 = vpack.c.b16 %v33, %v32
    %vm36 = vcmask 130048
    %v38 = vsel %vm36, %v22, 0
    %v41 = vsel %vm36, %v23, 0
    %43 = vmatpush.bf16.msra.mxu0 0
    %44 = vmatpush.bf16.msra.mxu0 0
    %45 = vmatpush.bf16.msra.mxu0 0
    %46 = vmatpush.bf16.msra.mxu0 0
    %47 = vmatpush.bf16.msra.mxu0 0
    %48 = vmatpush.bf16.msra.mxu0 0
    %49 = vmatpush.bf16.msra.mxu0 0
    %50 = vmatpush.bf16.msra.mxu0 %v34
    %51 = vmatmul.bf16.gmra.mxu0 %v38
    %v52 = vpop.f32.mrf.mxu0
    %v53 = vadd.f32 %v28, %v52
    %v54 = vpop.f32.mrf.mxu0
    %v55 = vadd.f32 %v28, %v54
    %56 = vmatmul.bf16.gmra.mxu0 %v41
    %v57 = vpop.f32.mrf.mxu0
    %v58 = vadd.f32 %v28, %v57
    %v59 = vpop.f32.mrf.mxu0
    %60 = vdwg.mxu0
    %s61 = smul.u32 0, 24
    %v62 = vlaneseq
    %v63 = vshrl.u32 %v62, 7
    %v64 = vadd.s32 %v63, 8
    %v65 = vadd.s32 %v63, 16
    %v66 = vstv %s61
    %v67 = vadd.s32 %v66, %v63
    %v68 = vadd.s32 %v66, %v64
    %v69 = vadd.s32 %v66, %v65
    %vm70 = vcmp.ge.s32.totalorder %v67, 16
    %vm71 = vcmp.ge.s32.totalorder %v68, 16
    %vm72 = vcmp.ge.s32.totalorder %v69, 16
    %v73 = vld [vmem:[%s3] sm:$0x1]
    %v74 = vsel %vm70, 1, 0
    %v75 = vsel %vm71, 1, 0
    %v76 = vsel %vm72, 1, 0
    %vm77 = vcmp.eq.s32.totalorder %v74, 1
    %vm78 = vcmp.eq.s32.totalorder %v75, 1
    %vm79 = vcmp.eq.s32.totalorder %v76, 1
    %v81 = vperm.slane %v73, 0
    %v83 = vsel %vm77, %v81, %v53
    %v84 = vsel %vm78, %v81, %v55
    %v85 = vsel %vm79, %v81, %v58
    %86 = vst [vmem:[#allocation2] sm:$0xff] %v83
    %87 = vst [vmem:[#allocation2 + $0x8] sm:$0xff] %v84
    %88 = vst [vmem:[#allocation2 + $0x10] sm:$0xff] %v85
    // Predicated region
    $region18: #{tpu_custom_call.1} parent=1 // pred_check
      _
    $region19: #{tpu_custom_call.1} parent=1 // pred_check_branch
      %90 = sbr.rel (0) target = $region21
    $region20: #{tpu_custom_call.1} parent=1 // pred_region
      %92 = vsyncadd [#allocation3], 0
      %s93 = sshll.u32 [#allocation2], 4
      %s94 = int_to_ptr.vmem [resolvable:$true] %s93
      %s95 = sshll.u32 %s4, 4
      %s96 = int_to_ptr.hbm [resolvable:$true] %s95
      %101 = dma.vmem_to_hbm [thread:$0]  %s94, 384, %s96, [#allocation3], 128, 128, 8
    $region21: #{tpu_custom_call.1} parent=1 // pred_fallthru
      _
    // Predicated region
    $region22: #{tpu_custom_call.1} parent=1 // pred_check
      _
    $region23: #{tpu_custom_call.1} parent=1 // pred_check_branch
      %103 = sbr.rel (0) target = $region25
    $region24: #{tpu_custom_call.1} parent=1 // pred_region
      %105 = dma.done [#allocation3], 384
    $region25: #{tpu_custom_call.1} parent=1 // pred_fallthru
      _
    %106 = vsyncpa [#allocation3], 1

</llo_original>
